<compile_context>
chip_gen: v7x
topology: tpu7x:2x2x1
jax: 0.10.0
libtpu: 0.0.40
codegen_flags: <defaults>
</compile_context>

<pallas_src>
import functools

import jax
import jax.numpy as jnp
from jax.experimental import pallas as pl
from jax.experimental.pallas import tpu as pltpu

LANE = 128                 # every feature dim is zero-padded to this in VMEM
SLAB_ROWS = LANE + 8       # 128 weight rows + 1 bias row (rounded to sublane=8)
SLAB_COLS = 3 * LANE       # [W1 | W2 | W3] side by side on the lane axis


def _round_up(a, m):
    return (a + m - 1) // m * m


def _mlp_kernel(x_ref, p_ref, o_ref, xpad_ref, *, in_features, out_features):
    # Zero-pad the (tm, in_features) input tile to the full 128-lane width in
    # a VMEM scratch so every matmul operand is a clean, lane-dense 128-wide
    # bf16 tile.  The zero lanes hit zero weight rows, so the result is exact.
    xpad_ref[...] = jnp.zeros_like(xpad_ref)
    xpad_ref[:, :in_features] = x_ref[...].astype(xpad_ref.dtype)
    x = xpad_ref[...]                                      # (tm, 128) bf16

    w1 = p_ref[0:LANE, 0:LANE]                             # (128, 128) bf16
    w2 = p_ref[0:LANE, LANE:2 * LANE]
    w3 = p_ref[0:LANE, 2 * LANE:3 * LANE]
    b1 = p_ref[LANE:LANE + 1, 0:LANE]                      # (1, 128) bf16
    b2 = p_ref[LANE:LANE + 1, LANE:2 * LANE]
    b3 = p_ref[LANE:LANE + 1, 2 * LANE:3 * LANE]

    h1 = jnp.maximum(
        jnp.dot(x, w1, preferred_element_type=jnp.float32) + b1, 0.0)
    h2 = jnp.maximum(
        jnp.dot(h1.astype(jnp.bfloat16), w2,
                preferred_element_type=jnp.float32) + b2, 0.0)
    out = jnp.dot(h2.astype(jnp.bfloat16), w3,
                  preferred_element_type=jnp.float32) + b3

    # Narrow (tm, out_features) store -> minimal HBM writeback.
    o_ref[...] = out[:, :out_features].astype(o_ref.dtype)


def pack_params(params):
    """Zero-pad and concatenate (W1,b1,W2,b2,W3,b3) into one bf16 [136,384] slab."""
    w1, b1, w2, b2, w3, b3 = params
    for w in (w1, w2, w3):
        assert w.shape[0] <= LANE and w.shape[1] <= LANE

    slab = jnp.zeros((SLAB_ROWS, SLAB_COLS), jnp.float32)
    for idx, (w, b) in enumerate(((w1, b1), (w2, b2), (w3, b3))):
        c0 = idx * LANE
        slab = slab.at[:w.shape[0], c0:c0 + w.shape[1]].set(w.astype(jnp.float32))
        bv = b.reshape(-1).astype(jnp.float32)
        slab = slab.at[LANE, c0:c0 + bv.shape[0]].set(bv)
    return slab.astype(jnp.bfloat16)


@functools.partial(jax.jit, static_argnames=("out_features",))
def mlp_forward(x, packed_params, out_features=14):
    batch, in_features = x.shape
    assert in_features <= LANE and out_features <= LANE

    # Batch tiling: whole (8-aligned) batch for small inputs; for large
    # batches use big tiles (amortize per-step overhead) while keeping >=2
    # grid steps so the "parallel" axis can use both v7x TensorCores.
    batch8 = _round_up(batch, 8)
    if batch8 <= 1024:
        tm = batch8
    else:
        n_tiles = max(2, pl.cdiv(batch8, 2048))
        tm = _round_up(pl.cdiv(batch8, n_tiles), 8)
    batch_pad = _round_up(batch8, tm)

    xp = x.astype(jnp.float32)
    if batch_pad != batch:
        xp = jnp.pad(xp, ((0, batch_pad - batch), (0, 0)))

    kernel = functools.partial(
        _mlp_kernel, in_features=in_features, out_features=out_features)

    out = pl.pallas_call(
        kernel,
        out_shape=jax.ShapeDtypeStruct((batch_pad, out_features), jnp.float32),
        grid=(batch_pad // tm,),
        in_specs=[
            # Raw (tm, in_features) block: full last dim -> legal, minimal DMA.
            pl.BlockSpec((tm, in_features), lambda i: (i, 0)),
            # Constant index_map -> params slab stays resident across the grid.
            pl.BlockSpec((SLAB_ROWS, SLAB_COLS), lambda i: (0, 0)),
        ],
        out_specs=pl.BlockSpec((tm, out_features), lambda i: (i, 0)),
        scratch_shapes=[pltpu.VMEM((tm, LANE), jnp.bfloat16)],
        compiler_params=pltpu.CompilerParams(
            dimension_semantics=("parallel",)),
    )(xp, packed_params)

    if batch_pad != batch:
        out = out[:batch]
    return out


def init_params(key, in_features=7, h1=32, h2=32, out_features=14):
    # Deterministic init mimicking nn.Linear's U(-1/sqrt(fan_in), 1/sqrt(fan_in)).
    ks = jax.random.split(key, 6)

    def linear(kw, kb, fan_in, fan_out):
        bound = 1.0 / jnp.sqrt(float(fan_in))
        w = jax.random.uniform(kw, (fan_in, fan_out), jnp.float32, -bound, bound)
        b = jax.random.uniform(kb, (1, fan_out), jnp.float32, -bound, bound)
        return w, b

    w1, b1 = linear(ks[0], ks[1], in_features, h1)
    w2, b2 = linear(ks[2], ks[3], h1, h2)
    w3, b3 = linear(ks[4], ks[5], h2, out_features)
    return (w1, b1, w2, b2, w3, b3)


def reference_forward(x, params):
    w1, b1, w2, b2, w3, b3 = params
    h1 = jnp.maximum(x @ w1 + b1, 0.0)
    h2 = jnp.maximum(h1 @ w2 + b2, 0.0)
    return h2 @ w3 + b3


if __name__ == "__main__":
    key = jax.random.PRNGKey(0)
    k_params, k_x = jax.random.split(key)

    batch, in_features, h1, h2, out_features = 8, 7, 32, 32, 14
    params = init_params(k_params, in_features, h1, h2, out_features)
    x = jax.random.normal(k_x, (batch, in_features), jnp.float32)

    packed = pack_params(params)          # one-time packing (amortized)
    out = mlp_forward(x, packed, out_features=out_features)
    jax.block_until_ready(out)

    ref = reference_forward(x, params)
    assert out.shape == (batch, out_features)
    # bf16 matmul operands (f32 accumulation) -> agree with the f32 reference
    # to ~1e-2 absolute at these magnitudes.
    assert jnp.allclose(out, ref, atol=5e-2, rtol=5e-2)

    print("KERNEL_OK")
</pallas_src>

<mosaic_0001>
module attributes {stable_mosaic.version = 11 : i64} {
  func.func @_mlp_kernel(%arg0: i32, %arg1: memref<8x7xf32, #tpu.memory_space<vmem>>, %arg2: memref<136x384xbf16, #tpu.memory_space<vmem>>, %arg3: memref<8x14xf32, #tpu.memory_space<vmem>>, %arg4: memref<8x128xbf16, #tpu.memory_space<vmem>>) attributes {dimension_semantics = [#tpu.dimension_semantics<parallel>], iteration_bounds = array<i64: 1>, scalar_prefetch = 0 : i64, scratch_operands = 1 : i64, tpu.core_type = #tpu.core_type<tc>, window_params = [{transform_indices = @transform_0, window_bounds = array<i64: 8, 7>}, {pipeline_mode = #tpu.pipeline_mode<synchronous>, transform_indices = @transform_1, window_bounds = array<i64: 136, 384>}, {transform_indices = @transform_2, window_bounds = array<i64: 8, 14>}]} {
    %cst = arith.constant 0.000000e+00 : bf16
    %0 = vector.broadcast %cst : bf16 to vector<8x128xbf16>
    %c0 = arith.constant 0 : index
    %c0_0 = arith.constant 0 : index
    %1 = vector.load %arg4[%c0, %c0_0] : memref<8x128xbf16, #tpu.memory_space<vmem>>, vector<8x128xbf16>
    tpu.vector_store %arg4[%c0, %c0_0], %0 {strides = array<i32>} : memref<8x128xbf16, #tpu.memory_space<vmem>>, vector<8x128xbf16>,
    %c0_1 = arith.constant 0 : index
    %c0_2 = arith.constant 0 : index
    %2 = vector.load %arg1[%c0_1, %c0_2] : memref<8x7xf32, #tpu.memory_space<vmem>>, vector<8x7xf32>
    %3 = arith.truncf %2 : vector<8x7xf32> to vector<8x7xbf16>
    %c0_3 = arith.constant 0 : index
    %c0_4 = arith.constant 0 : index
    %4 = vector.load %arg4[%c0_3, %c0_4] : memref<8x128xbf16, #tpu.memory_space<vmem>>, vector<8x7xbf16>
    tpu.vector_store %arg4[%c0_3, %c0_4], %3 {strides = array<i32>} : memref<8x128xbf16, #tpu.memory_space<vmem>>, vector<8x7xbf16>,
    %c0_5 = arith.constant 0 : index
    %c0_6 = arith.constant 0 : index
    %5 = vector.load %arg4[%c0_5, %c0_6] : memref<8x128xbf16, #tpu.memory_space<vmem>>, vector<8x128xbf16>
    %c0_7 = arith.constant 0 : index
    %c0_8 = arith.constant 0 : index
    %6 = vector.load %arg2[%c0_7, %c0_8] : memref<136x384xbf16, #tpu.memory_space<vmem>>, vector<128x128xbf16>
    %c0_9 = arith.constant 0 : index
    %c128 = arith.constant 128 : index
    %7 = vector.load %arg2[%c0_9, %c128] : memref<136x384xbf16, #tpu.memory_space<vmem>>, vector<128x128xbf16>
    %c0_10 = arith.constant 0 : index
    %c256 = arith.constant 256 : index
    %8 = vector.load %arg2[%c0_10, %c256] : memref<136x384xbf16, #tpu.memory_space<vmem>>, vector<128x128xbf16>
    %c128_11 = arith.constant 128 : index
    %c0_12 = arith.constant 0 : index
    %9 = vector.load %arg2[%c128_11, %c0_12] : memref<136x384xbf16, #tpu.memory_space<vmem>>, vector<1x128xbf16>
    %c128_13 = arith.constant 128 : index
    %c128_14 = arith.constant 128 : index
    %10 = vector.load %arg2[%c128_13, %c128_14] : memref<136x384xbf16, #tpu.memory_space<vmem>>, vector<1x128xbf16>
    %c128_15 = arith.constant 128 : index
    %c256_16 = arith.constant 256 : index
    %11 = vector.load %arg2[%c128_15, %c256_16] : memref<136x384xbf16, #tpu.memory_space<vmem>>, vector<1x128xbf16>
    %cst_17 = arith.constant dense<0.000000e+00> : vector<8x128xf32>
    %12 = tpu.matmul %5, %6, %cst_17 {dimension_numbers = #tpu.dot_dimension_numbers<[1], [0], [0], [1], [0, 0, 1, 1], [], []>} : vector<8x128xbf16>, vector<128x128xbf16>, vector<8x128xf32> -> vector<8x128xf32>
    %13 = arith.extf %9 : vector<1x128xbf16> to vector<1x128xf32>
    %14 = vector.broadcast %13 : vector<1x128xf32> to vector<8x128xf32>
    %15 = arith.addf %12, %14 : vector<8x128xf32>
    %cst_18 = arith.constant 0.000000e+00 : f32
    %16 = vector.broadcast %cst_18 : f32 to vector<8x128xf32>
    %17 = arith.maximumf %15, %16 : vector<8x128xf32>
    %18 = arith.truncf %17 : vector<8x128xf32> to vector<8x128xbf16>
    %cst_19 = arith.constant dense<0.000000e+00> : vector<8x128xf32>
    %19 = tpu.matmul %18, %7, %cst_19 {dimension_numbers = #tpu.dot_dimension_numbers<[1], [0], [0], [1], [0, 0, 1, 1], [], []>} : vector<8x128xbf16>, vector<128x128xbf16>, vector<8x128xf32> -> vector<8x128xf32>
    %20 = arith.extf %10 : vector<1x128xbf16> to vector<1x128xf32>
    %21 = vector.broadcast %20 : vector<1x128xf32> to vector<8x128xf32>
    %22 = arith.addf %19, %21 : vector<8x128xf32>
    %cst_20 = arith.constant 0.000000e+00 : f32
    %23 = vector.broadcast %cst_20 : f32 to vector<8x128xf32>
    %24 = arith.maximumf %22, %23 : vector<8x128xf32>
    %25 = arith.truncf %24 : vector<8x128xf32> to vector<8x128xbf16>
    %cst_21 = arith.constant dense<0.000000e+00> : vector<8x128xf32>
    %26 = tpu.matmul %25, %8, %cst_21 {dimension_numbers = #tpu.dot_dimension_numbers<[1], [0], [0], [1], [0, 0, 1, 1], [], []>} : vector<8x128xbf16>, vector<128x128xbf16>, vector<8x128xf32> -> vector<8x128xf32>
    %27 = arith.extf %11 : vector<1x128xbf16> to vector<1x128xf32>
    %28 = vector.broadcast %27 : vector<1x128xf32> to vector<8x128xf32>
    %29 = arith.addf %26, %28 : vector<8x128xf32>
    %30 = vector.extract_strided_slice %29 {offsets = [0, 0], sizes = [8, 14], strides = [1, 1]} : vector<8x128xf32> to vector<8x14xf32>
    %c0_22 = arith.constant 0 : index
    %c0_23 = arith.constant 0 : index
    %31 = vector.load %arg3[%c0_22, %c0_23] : memref<8x14xf32, #tpu.memory_space<vmem>>, vector<8x14xf32>
    tpu.vector_store %arg3[%c0_22, %c0_23], %30 {strides = array<i32>} : memref<8x14xf32, #tpu.memory_space<vmem>>, vector<8x14xf32>,
    return
  }
  func.func @transform_0(%arg0: i32) -> (i32, i32) {
    %c0_i32 = arith.constant 0 : i32
    %c0_i32_0 = arith.constant 0 : i32
    return %arg0, %c0_i32 : i32, i32
  }
  func.func @transform_1(%arg0: i32) -> (i32, i32) {
    %c0_i32 = arith.constant 0 : i32
    %c0_i32_0 = arith.constant 0 : i32
    %c0_i32_1 = arith.constant 0 : i32
    return %c0_i32, %c0_i32_0 : i32, i32
  }
  func.func @transform_2(%arg0: i32) -> (i32, i32) {
    %c0_i32 = arith.constant 0 : i32
    %c0_i32_0 = arith.constant 0 : i32
    return %arg0, %c0_i32 : i32, i32
  }
}

</mosaic_0001>

<llo_original>
// kernel: mlp_forward.1
$region0: #{mlp_forward.1}
  #allocation0 [shape = 'u32[]', space=smem, size = 0x4, offset = 0x4, fixed_abs, tag = 'smem constant byte address 0x4 - core index']
  #allocation1 [shape = 'u32[144,128]{1,0:T(1,128)}', space=vmem, size = 0x12000, scoped, tag = 'internal scratch']
  #allocation2 [shape = 'bf16[8,128]{1,0:T(8,128)(2,1)}', space=vmem, size = 0x800, scoped, tag = 'scratch operand']
  %s0 = inlined_call_operand.hbm [shape: f32[8,7], index: 0, kind: input, shape index: {}]
  %s1 = inlined_call_operand.hbm [shape: bf16[136,384], index: 1, kind: input, shape index: {}]
  %s2 = inlined_call_operand.hbm [shape: f32[8,14], index: 2, kind: output, shape index: {}]
  %s3 = sld [smem:[#allocation0]]
  $region26: #{mlp_forward.1} parent=0
    _
  %s5 = ssub.s32 1, %s3
  %s6 = scalar_select 0, %s5, %s3
  $region1: #{mlp_forward.1} parent=0
    #allocation3 [shape = 'u8[4096]{0}', space=vmem, size = 0x1000, scoped, tag = 'input window, operand 0, single buffered']
    #allocation4 [shape = 's32[1]{0}', space=sflag, size = 0x4, scoped, tag = 'scoped memory for mlp_forward.1']
    #allocation5 [shape = 's32[1]{0}', space=sflag, size = 0x4, scoped, tag = 'scoped memory for mlp_forward.1']
    #allocation6 [shape = 'u8[104448]{0}', space=vmem, size = 0x19800, scoped, tag = 'input window, operand 1, single buffered']
    #allocation7 [shape = 's32[1]{0}', space=sflag, size = 0x4, scoped, tag = 'scoped memory for mlp_forward.1']
    #allocation8 [shape = 'u8[4096]{0}', space=vmem, size = 0x1000, scoped, tag = 'output window, operand 0, single buffered']
    %7 = vsyncpa [#allocation4], 0
    %8 = vsyncpa [#allocation7], 0
    %9 = vsyncpa [#allocation5], 0
    // Predicated region
    $region2: #{mlp_forward.1} parent=1 // pred_check
      _
    $region3: #{mlp_forward.1} parent=1 // pred_check_branch
      %11 = sbr.rel (0) target = $region5
    $region4: #{mlp_forward.1} parent=1 // pred_region
      %s13 = ssub.s32 128, 128
      %14 = vsyncadd [#allocation4], %s13
      %s16 = sshll.u32 [#allocation3], 4
      %s17 = int_to_ptr.vmem [resolvable:$true] %s16
      %19 = dma.hbm_to_vmem [thread:$0]  %s0, 128, %s17, [#allocation4]
    $region5: #{mlp_forward.1} parent=1 // pred_fallthru
      _
    // Predicated region
    $region6: #{mlp_forward.1} parent=1 // pred_check
      _
    $region7: #{mlp_forward.1} parent=1 // pred_check_branch
      %21 = sbr.rel (0) target = $region9
    $region8: #{mlp_forward.1} parent=1 // pred_region
      %s23 = ssub.s32 3264, 3264
      %24 = vsyncadd [#allocation7], %s23
      %s25 = sshll.u32 [#allocation6], 4
      %s26 = int_to_ptr.vmem [resolvable:$true] %s25
      %31 = dma.hbm_to_vmem [thread:$0]  %s1, 3264, %s26, [#allocation7], 192, 192, 12
    $region9: #{mlp_forward.1} parent=1 // pred_fallthru
      _
    // Predicated region
    $region10: #{mlp_forward.1} parent=1 // pred_check
      _
    $region11: #{mlp_forward.1} parent=1 // pred_check_branch
      %33 = sbr.rel (0) target = $region13
    $region12: #{mlp_forward.1} parent=1 // pred_region
      %34 = dma.done [#allocation4], 128
    $region13: #{mlp_forward.1} parent=1 // pred_fallthru
      _
    // Predicated region
    $region14: #{mlp_forward.1} parent=1 // pred_check
      _
    $region15: #{mlp_forward.1} parent=1 // pred_check_branch
      %36 = sbr.rel (0) target = $region17
    $region16: #{mlp_forward.1} parent=1 // pred_region
      %37 = dma.done [#allocation7], 3264
    $region17: #{mlp_forward.1} parent=1 // pred_fallthru
      _
    %39 = vst [vmem:[#allocation2] sm:$0xf] 0
    %v40 = vld [vmem:[#allocation3] sm:$0xff]
    %v41 = vpack.c.bf16 %v40, %v40
    %vm42 = vcmask 52224
    %43 = vst.msk [vmem:[#allocation2] sm:$0xf] %vm42, %v41
    %v44 = vld [vmem:[#allocation2] sm:$0xf]
    %v45 = vld [vmem:[#allocation6] sm:$0xf]
    %v46 = vld [vmem:[#allocation6 + $0xc] sm:$0xf]
    %v47 = vld [vmem:[#allocation6 + $0x18] sm:$0xf]
    %v48 = vld [vmem:[#allocation6 + $0x24] sm:$0xf]
    %v49 = vld [vmem:[#allocation6 + $0x30] sm:$0xf]
    %v50 = vld [vmem:[#allocation6 + $0x3c] sm:$0xf]
    %v51 = vld [vmem:[#allocation6 + $0x48] sm:$0xf]
    %v52 = vld [vmem:[#allocation6 + $0x54] sm:$0xf]
    %v53 = vld [vmem:[#allocation6 + $0x60] sm:$0xf]
    %v54 = vld [vmem:[#allocation6 + $0x6c] sm:$0xf]
    %v55 = vld [vmem:[#allocation6 + $0x78] sm:$0xf]
    %v56 = vld [vmem:[#allocation6 + $0x84] sm:$0xf]
    %v57 = vld [vmem:[#allocation6 + $0x90] sm:$0xf]
    %v58 = vld [vmem:[#allocation6 + $0x9c] sm:$0xf]
    %v59 = vld [vmem:[#allocation6 + $0xa8] sm:$0xf]
    %v60 = vld [vmem:[#allocation6 + $0xb4] sm:$0xf]
    %v61 = vld [vmem:[#allocation6 + $0x4] sm:$0xf]
    %v62 = vld [vmem:[#allocation6 + $0x10] sm:$0xf]
    %v63 = vld [vmem:[#allocation6 + $0x1c] sm:$0xf]
    %v64 = vld [vmem:[#allocation6 + $0x28] sm:$0xf]
    %v65 = vld [vmem:[#allocation6 + $0x34] sm:$0xf]
    %v66 = vld [vmem:[#allocation6 + $0x40] sm:$0xf]
    %v67 = vld [vmem:[#allocation6 + $0x4c] sm:$0xf]
    %v68 = vld [vmem:[#allocation6 + $0x58] sm:$0xf]
    %v69 = vld [vmem:[#allocation6 + $0x64] sm:$0xf]
    %v70 = vld [vmem:[#allocation6 + $0x70] sm:$0xf]
    %v71 = vld [vmem:[#allocation6 + $0x7c] sm:$0xf]
    %v72 = vld [vmem:[#allocation6 + $0x88] sm:$0xf]
    %v73 = vld [vmem:[#allocation6 + $0x94] sm:$0xf]
    %v74 = vld [vmem:[#allocation6 + $0xa0] sm:$0xf]
    %v75 = vld [vmem:[#allocation6 + $0xac] sm:$0xf]
    %v76 = vld [vmem:[#allocation6 + $0xb8] sm:$0xf]
    %v77 = vld [vmem:[#allocation6 + $0x8] sm:$0xf]
    %v78 = vld [vmem:[#allocation6 + $0x14] sm:$0xf]
    %v79 = vld [vmem:[#allocation6 + $0x20] sm:$0xf]
    %v80 = vld [vmem:[#allocation6 + $0x2c] sm:$0xf]
    %v81 = vld [vmem:[#allocation6 + $0x38] sm:$0xf]
    %v82 = vld [vmem:[#allocation6 + $0x44] sm:$0xf]
    %v83 = vld [vmem:[#allocation6 + $0x50] sm:$0xf]
    %v84 = vld [vmem:[#allocation6 + $0x5c] sm:$0xf]
    %v85 = vld [vmem:[#allocation6 + $0x68] sm:$0xf]
    %v86 = vld [vmem:[#allocation6 + $0x74] sm:$0xf]
    %v87 = vld [vmem:[#allocation6 + $0x80] sm:$0xf]
    %v88 = vld [vmem:[#allocation6 + $0x8c] sm:$0xf]
    %v89 = vld [vmem:[#allocation6 + $0x98] sm:$0xf]
    %v90 = vld [vmem:[#allocation6 + $0xa4] sm:$0xf]
    %v91 = vld [vmem:[#allocation6 + $0xb0] sm:$0xf]
    %v92 = vld [vmem:[#allocation6 + $0xbc] sm:$0xf]
    %v93 = vld [vmem:[#allocation6 + $0xc0] sm:$0x1]
    %v94 = vld [vmem:[#allocation6 + $0xc4] sm:$0x1]
    %v95 = vld [vmem:[#allocation6 + $0xc8] sm:$0x1]
    %v96 = vunpack.c.l.bf16 %v93
    %v97 = vlaneseq
    %v98 = vshrl.u32 %v97, 7
    %v99 = vsub.s32 0, %v98
    %v100 = vrot.slane %v96, %v99
    %v117 = vunpack.c.l.b16 %v45
    %v118 = vunpack.c.l.b16 %v46
    %v119 = vunpack.c.l.b16 %v47
    %v120 = vunpack.c.l.b16 %v48
    %v121 = vunpack.c.l.b16 %v49
    %v122 = vunpack.c.l.b16 %v50
    %v123 = vunpack.c.l.b16 %v51
    %v124 = vunpack.c.l.b16 %v52
    %v125 = vunpack.c.l.b16 %v53
    %v126 = vunpack.c.l.b16 %v54
    %v127 = vunpack.c.l.b16 %v55
    %v128 = vunpack.c.l.b16 %v56
    %v129 = vunpack.c.l.b16 %v57
    %v130 = vunpack.c.l.b16 %v58
    %v131 = vunpack.c.l.b16 %v59
    %v132 = vunpack.c.l.b16 %v60
    %v133 = vpack.c.b16 %v118, %v117
    %v134 = vpack.c.b16 %v120, %v119
    %v135 = vpack.c.b16 %v122, %v121
    %v136 = vpack.c.b16 %v124, %v123
    %v137 = vpack.c.b16 %v126, %v125
    %v138 = vpack.c.b16 %v128, %v127
    %v139 = vpack.c.b16 %v130, %v129
    %v140 = vpack.c.b16 %v132, %v131
    %149 = vmatprep.subr.bf16.mxu0 0
    %150 = vmatpush1.bf16.msra.mxu0 %v133
    %151 = vmatprep.subr.bf16.mxu0 0
    %152 = vmatpush1.bf16.msra.mxu0 %v134
    %153 = vmatprep.subr.bf16.mxu0 0
    %154 = vmatpush1.bf16.msra.mxu0 %v135
    %155 = vmatprep.subr.bf16.mxu0 0
    %156 = vmatpush1.bf16.msra.mxu0 %v136
    %157 = vmatprep.subr.bf16.mxu0 0
    %158 = vmatpush1.bf16.msra.mxu0 %v137
    %159 = vmatprep.subr.bf16.mxu0 0
    %160 = vmatpush1.bf16.msra.mxu0 %v138
    %161 = vmatprep.subr.bf16.mxu0 0
    %162 = vmatpush1.bf16.msra.mxu0 %v139
    %163 = vmatprep.subr.bf16.mxu0 0
    %164 = vmatpush1.bf16.msra.mxu0 %v140
    %165 = vmatprep.subr.bf16.mxu0 0
    %166 = vmatpush1.bf16.msra.mxu0 0
    %167 = vmatprep.subr.bf16.mxu0 0
    %168 = vmatpush1.bf16.msra.mxu0 0
    %169 = vmatprep.subr.bf16.mxu0 0
    %170 = vmatpush1.bf16.msra.mxu0 0
    %171 = vmatprep.subr.bf16.mxu0 0
    %172 = vmatpush1.bf16.msra.mxu0 0
    %173 = vmatprep.subr.bf16.mxu0 0
    %174 = vmatpush1.bf16.msra.mxu0 0
    %175 = vmatprep.subr.bf16.mxu0 0
    %176 = vmatpush1.bf16.msra.mxu0 0
    %177 = vmatprep.subr.bf16.mxu0 0
    %178 = vmatpush1.bf16.msra.mxu0 0
    %179 = vmatprep.subr.bf16.mxu0 0
    %180 = vmatpush1.bf16.msra.mxu0 0
    %181 = vmatprep.mubr.bf16.mxu0 0
    %182 = vmatmul.mubr.bf16.gmra.mrb[0].mxu0 %v44
    %v183 = vpop.f32.mrb[0].mxu0
    %v184 = vadd.f32 %v100, %v183
    %v185 = vpop.f32.mrb[0].mxu0
    %v186 = vpop.f32.mrb[0].mxu0
    %v187 = vpop.f32.mrb[0].mxu0
    %188 = vdwg.mxu0
    %v189 = vmax.f32 %v184, 0.0
    %v190 = vpack.c.bf16 %v189, %v189
    %v191 = vunpack.c.l.bf16 %v94
    %v192 = vlaneseq
    %v193 = vshrl.u32 %v192, 7
    %v194 = vsub.s32 0, %v193
    %v195 = vrot.slane %v191, %v194
    %v212 = vunpack.c.l.b16 %v61
    %v213 = vunpack.c.l.b16 %v62
    %v214 = vunpack.c.l.b16 %v63
    %v215 = vunpack.c.l.b16 %v64
    %v216 = vunpack.c.l.b16 %v65
    %v217 = vunpack.c.l.b16 %v66
    %v218 = vunpack.c.l.b16 %v67
    %v219 = vunpack.c.l.b16 %v68
    %v220 = vunpack.c.l.b16 %v69
    %v221 = vunpack.c.l.b16 %v70
    %v222 = vunpack.c.l.b16 %v71
    %v223 = vunpack.c.l.b16 %v72
    %v224 = vunpack.c.l.b16 %v73
    %v225 = vunpack.c.l.b16 %v74
    %v226 = vunpack.c.l.b16 %v75
    %v227 = vunpack.c.l.b16 %v76
    %v228 = vpack.c.b16 %v213, %v212
    %v229 = vpack.c.b16 %v215, %v214
    %v230 = vpack.c.b16 %v217, %v216
    %v231 = vpack.c.b16 %v219, %v218
    %v232 = vpack.c.b16 %v221, %v220
    %v233 = vpack.c.b16 %v223, %v222
    %v234 = vpack.c.b16 %v225, %v224
    %v235 = vpack.c.b16 %v227, %v226
    %244 = vmatprep.subr.bf16.mxu0 0
    %245 = vmatpush1.bf16.msra.mxu0 %v228
    %246 = vmatprep.subr.bf16.mxu0 0
    %247 = vmatpush1.bf16.msra.mxu0 %v229
    %248 = vmatprep.subr.bf16.mxu0 0
    %249 = vmatpush1.bf16.msra.mxu0 %v230
    %250 = vmatprep.subr.bf16.mxu0 0
    %251 = vmatpush1.bf16.msra.mxu0 %v231
    %252 = vmatprep.subr.bf16.mxu0 0
    %253 = vmatpush1.bf16.msra.mxu0 %v232
    %254 = vmatprep.subr.bf16.mxu0 0
    %255 = vmatpush1.bf16.msra.mxu0 %v233
    %256 = vmatprep.subr.bf16.mxu0 0
    %257 = vmatpush1.bf16.msra.mxu0 %v234
    %258 = vmatprep.subr.bf16.mxu0 0
    %259 = vmatpush1.bf16.msra.mxu0 %v235
    %260 = vmatprep.subr.bf16.mxu0 0
    %261 = vmatpush1.bf16.msra.mxu0 0
    %262 = vmatprep.subr.bf16.mxu0 0
    %263 = vmatpush1.bf16.msra.mxu0 0
    %264 = vmatprep.subr.bf16.mxu0 0
    %265 = vmatpush1.bf16.msra.mxu0 0
    %266 = vmatprep.subr.bf16.mxu0 0
    %267 = vmatpush1.bf16.msra.mxu0 0
    %268 = vmatprep.subr.bf16.mxu0 0
    %269 = vmatpush1.bf16.msra.mxu0 0
    %270 = vmatprep.subr.bf16.mxu0 0
    %271 = vmatpush1.bf16.msra.mxu0 0
    %272 = vmatprep.subr.bf16.mxu0 0
    %273 = vmatpush1.bf16.msra.mxu0 0
    %274 = vmatprep.subr.bf16.mxu0 0
    %275 = vmatpush1.bf16.msra.mxu0 0
    %276 = vmatprep.mubr.bf16.mxu0 0
    %277 = vmatmul.mubr.bf16.gmra.mrb[0].mxu0 %v190
    %v278 = vpop.f32.mrb[0].mxu0
    %v279 = vadd.f32 %v195, %v278
    %v280 = vpop.f32.mrb[0].mxu0
    %v281 = vpop.f32.mrb[0].mxu0
    %v282 = vpop.f32.mrb[0].mxu0
    %283 = vdwg.mxu0
    %v284 = vmax.f32 %v279, 0.0
    %v285 = vpack.c.bf16 %v284, %v284
    %v286 = vunpack.c.l.bf16 %v95
    %v287 = vlaneseq
    %v288 = vshrl.u32 %v287, 7
    %v289 = vsub.s32 0, %v288
    %v290 = vrot.slane %v286, %v289
    %v307 = vunpack.c.l.b16 %v77
    %v308 = vunpack.c.l.b16 %v78
    %v309 = vunpack.c.l.b16 %v79
    %v310 = vunpack.c.l.b16 %v80
    %v311 = vunpack.c.l.b16 %v81
    %v312 = vunpack.c.l.b16 %v82
    %v313 = vunpack.c.l.b16 %v83
    %v314 = vunpack.c.l.b16 %v84
    %v315 = vunpack.c.l.b16 %v85
    %v316 = vunpack.c.l.b16 %v86
    %v317 = vunpack.c.l.b16 %v87
    %v318 = vunpack.c.l.b16 %v88
    %v319 = vunpack.c.l.b16 %v89
    %v320 = vunpack.c.l.b16 %v90
    %v321 = vunpack.c.l.b16 %v91
    %v322 = vunpack.c.l.b16 %v92
    %v323 = vpack.c.b16 %v308, %v307
    %v324 = vpack.c.b16 %v310, %v309
    %v325 = vpack.c.b16 %v312, %v311
    %v326 = vpack.c.b16 %v314, %v313
    %v327 = vpack.c.b16 %v316, %v315
    %v328 = vpack.c.b16 %v318, %v317
    %v329 = vpack.c.b16 %v320, %v319
    %v330 = vpack.c.b16 %v322, %v321
    %339 = vmatprep.subr.bf16.mxu0 0
    %340 = vmatpush1.bf16.msra.mxu0 %v323
    %341 = vmatprep.subr.bf16.mxu0 0
    %342 = vmatpush1.bf16.msra.mxu0 %v324
    %343 = vmatprep.subr.bf16.mxu0 0
    %344 = vmatpush1.bf16.msra.mxu0 %v325
    %345 = vmatprep.subr.bf16.mxu0 0
    %346 = vmatpush1.bf16.msra.mxu0 %v326
    %347 = vmatprep.subr.bf16.mxu0 0
    %348 = vmatpush1.bf16.msra.mxu0 %v327
    %349 = vmatprep.subr.bf16.mxu0 0
    %350 = vmatpush1.bf16.msra.mxu0 %v328
    %351 = vmatprep.subr.bf16.mxu0 0
    %352 = vmatpush1.bf16.msra.mxu0 %v329
    %353 = vmatprep.subr.bf16.mxu0 0
    %354 = vmatpush1.bf16.msra.mxu0 %v330
    %355 = vmatprep.subr.bf16.mxu0 0
    %356 = vmatpush1.bf16.msra.mxu0 0
    %357 = vmatprep.subr.bf16.mxu0 0
    %358 = vmatpush1.bf16.msra.mxu0 0
    %359 = vmatprep.subr.bf16.mxu0 0
    %360 = vmatpush1.bf16.msra.mxu0 0
    %361 = vmatprep.subr.bf16.mxu0 0
    %362 = vmatpush1.bf16.msra.mxu0 0
    %363 = vmatprep.subr.bf16.mxu0 0
    %364 = vmatpush1.bf16.msra.mxu0 0
    %365 = vmatprep.subr.bf16.mxu0 0
    %366 = vmatpush1.bf16.msra.mxu0 0
    %367 = vmatprep.subr.bf16.mxu0 0
    %368 = vmatpush1.bf16.msra.mxu0 0
    %369 = vmatprep.subr.bf16.mxu0 0
    %370 = vmatpush1.bf16.msra.mxu0 0
    %371 = vmatprep.mubr.bf16.mxu0 0
    %372 = vmatmul.mubr.bf16.gmra.mrb[0].mxu0 %v285
    %v373 = vpop.f32.mrb[0].mxu0
    %v374 = vadd.f32 %v290, %v373
    %v375 = vpop.f32.mrb[0].mxu0
    %v376 = vpop.f32.mrb[0].mxu0
    %v377 = vpop.f32.mrb[0].mxu0
    %378 = vdwg.mxu0
    %vm379 = vcmask 113664
    %380 = vst.msk [vmem:[#allocation8] sm:$0xff] %vm379, %v374
    // Predicated region
    $region18: #{mlp_forward.1} parent=1 // pred_check
      _
    $region19: #{mlp_forward.1} parent=1 // pred_check_branch
      %382 = sbr.rel (0) target = $region21
    $region20: #{mlp_forward.1} parent=1 // pred_region
      %s384 = ssub.s32 128, 128
      %385 = vsyncadd [#allocation5], %s384
      %s387 = sshll.u32 [#allocation8], 4
      %s388 = int_to_ptr.vmem [resolvable:$true] %s387
      %390 = dma.vmem_to_hbm [thread:$0]  %s388, 128, %s2, [#allocation5]
    $region21: #{mlp_forward.1} parent=1 // pred_fallthru
      _
    // Predicated region
    $region22: #{mlp_forward.1} parent=1 // pred_check
      _
    $region23: #{mlp_forward.1} parent=1 // pred_check_branch
      %392 = sbr.rel (0) target = $region25
    $region24: #{mlp_forward.1} parent=1 // pred_region
      %393 = dma.done [#allocation5], 128
    $region25: #{mlp_forward.1} parent=1 // pred_fallthru
      _
    %394 = vsyncpa [#allocation4], 1
    %395 = vsyncpa [#allocation7], 1
    %396 = vsyncpa [#allocation5], 1

</llo_original>
